<compile_context>
chip_gen: v7x
topology: tpu7x:2x2x1
jax: 0.10.0
libtpu: 0.0.40
codegen_flags: <defaults>
</compile_context>

<pallas_src>
import jax
import jax.numpy as jnp
from jax.experimental import pallas as pl
from jax.experimental.pallas import tpu as pltpu


def _round_up(x, m):
    return ((x + m - 1) // m) * m


def _mlp_kernel(x_ref, w1_ref, b1_ref, w2_ref, b2_ref, out_ref, prompt_ref):
    # x_ref:      (TM, K1)   row tile
    # w1_ref:     (K1, H)    fc weight, pre-transposed
    # b1_ref:     (1,  H)
    # w2_ref:     (H,  K2)   fc2 weight, pre-transposed
    # b2_ref:     (1,  K2)
    # out_ref:    (TM, K2)
    # prompt_ref: (TM, H)
    x = x_ref[...]
    h = jnp.dot(x, w1_ref[...], preferred_element_type=jnp.float32) + b1_ref[...]
    p = jnp.maximum(h, 0.0)                                    # ReLU (VPU)
    y = (jnp.dot(p.astype(w2_ref.dtype), w2_ref[...],
                 preferred_element_type=jnp.float32) + b2_ref[...])
    prompt_ref[...] = p.astype(prompt_ref.dtype)
    out_ref[...] = y.astype(out_ref.dtype)


def mlp_forward(x, w1, b1, w2, b2, *, block_m=128):
    """Fused MLP forward.

    x : (..., input_size)
    w1: (prompt_dim, input_size)   -- PyTorch nn.Linear weight layout
    b1: (prompt_dim,)
    w2: (output_size, prompt_dim)
    b2: (output_size,)
    returns (out, prompt) with shapes (..., output_size), (..., prompt_dim)
    """
    lead_shape = x.shape[:-1]
    K1 = x.shape[-1]
    H, K1w = w1.shape
    K2, Hw = w2.shape
    assert K1 == K1w and H == Hw, "weight / input shape mismatch"

    # Pre-transpose weights once in the wrapper (no in-kernel transpose).
    w1_t = jnp.asarray(w1).T            # (K1, H)
    w2_t = jnp.asarray(w2).T            # (H, K2)
    b1_2d = jnp.asarray(b1).reshape(1, H)
    b2_2d = jnp.asarray(b2).reshape(1, K2)

    # Fuse all leading dims into one row axis (lane-dense layout plumbing).
    x2 = x.reshape(-1, K1)
    M = x2.shape[0]

    # Row tile: multiple of 8 sublanes; single step for small problems.
    tm = block_m if M >= block_m else _round_up(M, 8)
    m_pad = _round_up(M, tm)
    if m_pad != M:
        x2 = jnp.pad(x2, ((0, m_pad - M), (0, 0)))
    grid = (m_pad // tm,)

    dtype = x.dtype
    out_shapes = (
        jax.ShapeDtypeStruct((m_pad, K2), dtype),   # out
        jax.ShapeDtypeStruct((m_pad, H), dtype),    # prompt
    )

    grid_spec = pltpu.PrefetchScalarGridSpec(
        num_scalar_prefetch=0,
        grid=grid,
        in_specs=[
            pl.BlockSpec((tm, K1), lambda i: (i, 0)),   # x row tile
            pl.BlockSpec((K1, H), lambda i: (0, 0)),    # W1^T (resident)
            pl.BlockSpec((1, H), lambda i: (0, 0)),     # b1
            pl.BlockSpec((H, K2), lambda i: (0, 0)),    # W2^T (resident)
            pl.BlockSpec((1, K2), lambda i: (0, 0)),    # b2
        ],
        out_specs=[
            pl.BlockSpec((tm, K2), lambda i: (i, 0)),   # out row tile
            pl.BlockSpec((tm, H), lambda i: (i, 0)),    # prompt row tile
        ],
    )

    itemsize = jnp.dtype(dtype).itemsize
    cost = pl.CostEstimate(
        flops=2 * m_pad * (K1 * H + H * K2),
        transcendentals=0,
        bytes_accessed=itemsize * (m_pad * K1 + K1 * H + H + H * K2 + K2
                                   + m_pad * K2 + m_pad * H),
    )

    out_p, prompt_p = pl.pallas_call(
        _mlp_kernel,
        out_shape=out_shapes,
        grid_spec=grid_spec,
        compiler_params=pltpu.CompilerParams(
            dimension_semantics=("parallel",)),
        cost_estimate=cost,
    )(x2, w1_t, b1_2d, w2_t, b2_2d)

    out = out_p[:M].reshape(lead_shape + (K2,))
    prompt = prompt_p[:M].reshape(lead_shape + (H,))
    return out, prompt


if __name__ == "__main__":
    # Small shapes consistent with the module: batch=2, seq=16,
    # input_size=32, prompt_dim=64, output_size=16.
    key = jax.random.PRNGKey(0)
    kx, kw1, kb1, kw2, kb2 = jax.random.split(key, 5)

    B, S = 2, 16
    input_size, prompt_dim, output_size = 32, 64, 16

    x = jax.random.normal(kx, (B, S, input_size), dtype=jnp.float32)
    w1 = jax.random.normal(kw1, (prompt_dim, input_size), dtype=jnp.float32) * 0.1
    b1 = jax.random.normal(kb1, (prompt_dim,), dtype=jnp.float32) * 0.1
    w2 = jax.random.normal(kw2, (output_size, prompt_dim), dtype=jnp.float32) * 0.1
    b2 = jax.random.normal(kb2, (output_size,), dtype=jnp.float32) * 0.1

    out, prompt = mlp_forward(x, w1, b1, w2, b2)
    out = jax.block_until_ready(out)
    prompt = jax.block_until_ready(prompt)

    # Pure-JAX reference (matches PyTorch forward semantics).
    h_ref = jnp.einsum('bsk,hk->bsh', x, w1) + b1
    prompt_ref = jnp.maximum(h_ref, 0.0)
    out_ref = jnp.einsum('bsh,oh->bso', prompt_ref, w2) + b2

    assert out.shape == (B, S, output_size)
    assert prompt.shape == (B, S, prompt_dim)
    assert jnp.allclose(prompt, prompt_ref, atol=1e-4, rtol=1e-4), "prompt mismatch"
    assert jnp.allclose(out, out_ref, atol=1e-4, rtol=1e-4), "output mismatch"
    print("KERNEL_OK")
</pallas_src>

<mosaic_0001>
module attributes {stable_mosaic.version = 11 : i64} {
  func.func @_mlp_kernel(%arg0: i32, %arg1: memref<32x32xf32, #tpu.memory_space<vmem>>, %arg2: memref<32x64xf32, #tpu.memory_space<vmem>>, %arg3: memref<1x64xf32, #tpu.memory_space<vmem>>, %arg4: memref<64x16xf32, #tpu.memory_space<vmem>>, %arg5: memref<1x16xf32, #tpu.memory_space<vmem>>, %arg6: memref<32x16xf32, #tpu.memory_space<vmem>>, %arg7: memref<32x64xf32, #tpu.memory_space<vmem>>) attributes {dimension_semantics = [#tpu.dimension_semantics<parallel>], iteration_bounds = array<i64: 1>, scalar_prefetch = 0 : i64, scratch_operands = 0 : i64, tpu.core_type = #tpu.core_type<tc>, window_params = [{transform_indices = @transform_0, window_bounds = array<i64: 32, 32>}, {pipeline_mode = #tpu.pipeline_mode<synchronous>, transform_indices = @transform_1, window_bounds = array<i64: 32, 64>}, {pipeline_mode = #tpu.pipeline_mode<synchronous>, transform_indices = @transform_2, window_bounds = array<i64: 1, 64>}, {pipeline_mode = #tpu.pipeline_mode<synchronous>, transform_indices = @transform_3, window_bounds = array<i64: 64, 16>}, {pipeline_mode = #tpu.pipeline_mode<synchronous>, transform_indices = @transform_4, window_bounds = array<i64: 1, 16>}, {transform_indices = @transform_5, window_bounds = array<i64: 32, 16>}, {transform_indices = @transform_6, window_bounds = array<i64: 32, 64>}]} {
    %c0 = arith.constant 0 : index
    %c0_0 = arith.constant 0 : index
    %0 = vector.load %arg1[%c0, %c0_0] : memref<32x32xf32, #tpu.memory_space<vmem>>, vector<32x32xf32>
    %c0_1 = arith.constant 0 : index
    %c0_2 = arith.constant 0 : index
    %1 = vector.load %arg2[%c0_1, %c0_2] : memref<32x64xf32, #tpu.memory_space<vmem>>, vector<32x64xf32>
    %cst = arith.constant dense<0.000000e+00> : vector<32x64xf32>
    %2 = tpu.matmul %0, %1, %cst {dimension_numbers = #tpu.dot_dimension_numbers<[1], [0], [0], [1], [0, 0, 1, 1], [], []>} : vector<32x32xf32>, vector<32x64xf32>, vector<32x64xf32> -> vector<32x64xf32>
    %c0_3 = arith.constant 0 : index
    %c0_4 = arith.constant 0 : index
    %3 = vector.load %arg3[%c0_3, %c0_4] : memref<1x64xf32, #tpu.memory_space<vmem>>, vector<1x64xf32>
    %4 = vector.broadcast %3 : vector<1x64xf32> to vector<32x64xf32>
    %5 = arith.addf %2, %4 : vector<32x64xf32>
    %cst_5 = arith.constant 0.000000e+00 : f32
    %6 = vector.broadcast %cst_5 : f32 to vector<32x64xf32>
    %7 = arith.maximumf %5, %6 : vector<32x64xf32>
    %c0_6 = arith.constant 0 : index
    %c0_7 = arith.constant 0 : index
    %8 = vector.load %arg4[%c0_6, %c0_7] : memref<64x16xf32, #tpu.memory_space<vmem>>, vector<64x16xf32>
    %cst_8 = arith.constant dense<0.000000e+00> : vector<32x16xf32>
    %9 = tpu.matmul %7, %8, %cst_8 {dimension_numbers = #tpu.dot_dimension_numbers<[1], [0], [0], [1], [0, 0, 1, 1], [], []>} : vector<32x64xf32>, vector<64x16xf32>, vector<32x16xf32> -> vector<32x16xf32>
    %c0_9 = arith.constant 0 : index
    %c0_10 = arith.constant 0 : index
    %10 = vector.load %arg5[%c0_9, %c0_10] : memref<1x16xf32, #tpu.memory_space<vmem>>, vector<1x16xf32>
    %11 = vector.broadcast %10 : vector<1x16xf32> to vector<32x16xf32>
    %12 = arith.addf %9, %11 : vector<32x16xf32>
    %c0_11 = arith.constant 0 : index
    %c0_12 = arith.constant 0 : index
    %13 = vector.load %arg7[%c0_11, %c0_12] : memref<32x64xf32, #tpu.memory_space<vmem>>, vector<32x64xf32>
    tpu.vector_store %arg7[%c0_11, %c0_12], %7 {strides = array<i32>} : memref<32x64xf32, #tpu.memory_space<vmem>>, vector<32x64xf32>,
    %c0_13 = arith.constant 0 : index
    %c0_14 = arith.constant 0 : index
    %14 = vector.load %arg6[%c0_13, %c0_14] : memref<32x16xf32, #tpu.memory_space<vmem>>, vector<32x16xf32>
    tpu.vector_store %arg6[%c0_13, %c0_14], %12 {strides = array<i32>} : memref<32x16xf32, #tpu.memory_space<vmem>>, vector<32x16xf32>,
    return
  }
  func.func @transform_0(%arg0: i32) -> (i32, i32) {
    %c0_i32 = arith.constant 0 : i32
    %c0_i32_0 = arith.constant 0 : i32
    return %arg0, %c0_i32 : i32, i32
  }
  func.func @transform_1(%arg0: i32) -> (i32, i32) {
    %c0_i32 = arith.constant 0 : i32
    %c0_i32_0 = arith.constant 0 : i32
    %c0_i32_1 = arith.constant 0 : i32
    return %c0_i32, %c0_i32_0 : i32, i32
  }
  func.func @transform_2(%arg0: i32) -> (i32, i32) {
    %c0_i32 = arith.constant 0 : i32
    %c0_i32_0 = arith.constant 0 : i32
    %c0_i32_1 = arith.constant 0 : i32
    return %c0_i32, %c0_i32_0 : i32, i32
  }
  func.func @transform_3(%arg0: i32) -> (i32, i32) {
    %c0_i32 = arith.constant 0 : i32
    %c0_i32_0 = arith.constant 0 : i32
    %c0_i32_1 = arith.constant 0 : i32
    return %c0_i32, %c0_i32_0 : i32, i32
  }
  func.func @transform_4(%arg0: i32) -> (i32, i32) {
    %c0_i32 = arith.constant 0 : i32
    %c0_i32_0 = arith.constant 0 : i32
    %c0_i32_1 = arith.constant 0 : i32
    return %c0_i32, %c0_i32_0 : i32, i32
  }
  func.func @transform_5(%arg0: i32) -> (i32, i32) {
    %c0_i32 = arith.constant 0 : i32
    %c0_i32_0 = arith.constant 0 : i32
    return %arg0, %c0_i32 : i32, i32
  }
  func.func @transform_6(%arg0: i32) -> (i32, i32) {
    %c0_i32 = arith.constant 0 : i32
    %c0_i32_0 = arith.constant 0 : i32
    return %arg0, %c0_i32 : i32, i32
  }
}

</mosaic_0001>

<llo_original>
// kernel: tpu_custom_call.1
$region0: #{tpu_custom_call.1}
  #allocation0 [shape = 'u32[]', space=smem, size = 0x4, offset = 0x4, fixed_abs, tag = 'smem constant byte address 0x4 - core index']
  #allocation1 [shape = 'u32[144,128]{1,0:T(1,128)}', space=vmem, size = 0x12000, scoped, tag = 'internal scratch']
  %s0 = inlined_call_operand.vmem [shape: f32[32,32], index: 0, kind: input, shape index: {}]
  %s1 = inlined_call_operand.vmem [shape: f32[32,64], index: 1, kind: input, shape index: {}]
  %s2 = inlined_call_operand.vmem [shape: f32[1,64], index: 2, kind: input, shape index: {}]
  %s3 = inlined_call_operand.vmem [shape: f32[64,16], index: 3, kind: input, shape index: {}]
  %s4 = inlined_call_operand.vmem [shape: f32[1,16], index: 4, kind: input, shape index: {}]
  %s5 = inlined_call_operand.vmem [shape: f32[32,16], index: 5, kind: output, shape index: {0}]
  %s6 = inlined_call_operand.hbm [shape: f32[32,64], index: 6, kind: output, shape index: {1}]
  %7 = xla_tuple %s5, %s6
  %s8 = sld [smem:[#allocation0]]
  $region38: #{tpu_custom_call.1} parent=0
    _
  %s10 = ssub.s32 1, %s8
  %s11 = scalar_select 0, %s10, %s8
  $region1: #{tpu_custom_call.1} parent=0
    #allocation2 [shape = 'u8[16384]{0}', space=vmem, size = 0x4000, scoped, tag = 'output window, operand 1, single buffered']
    #allocation3 [shape = 's32[1]{0}', space=sflag, size = 0x4, scoped, tag = 'scoped memory for tpu_custom_call.1']
    %12 = vsyncpa [#allocation3], 0
    // Predicated region
    $region2: #{tpu_custom_call.1} parent=1 // pred_check
      _
    $region3: #{tpu_custom_call.1} parent=1 // pred_check_branch
      %14 = sbr.rel (0) target = $region5
    $region4: #{tpu_custom_call.1} parent=1 // pred_region
      _
    $region5: #{tpu_custom_call.1} parent=1 // pred_fallthru
      _
    // Predicated region
    $region6: #{tpu_custom_call.1} parent=1 // pred_check
      _
    $region7: #{tpu_custom_call.1} parent=1 // pred_check_branch
      %16 = sbr.rel (0) target = $region9
    $region8: #{tpu_custom_call.1} parent=1 // pred_region
      _
    $region9: #{tpu_custom_call.1} parent=1 // pred_fallthru
      _
    // Predicated region
    $region10: #{tpu_custom_call.1} parent=1 // pred_check
      _
    $region11: #{tpu_custom_call.1} parent=1 // pred_check_branch
      %18 = sbr.rel (0) target = $region13
    $region12: #{tpu_custom_call.1} parent=1 // pred_region
      _
    $region13: #{tpu_custom_call.1} parent=1 // pred_fallthru
      _
    // Predicated region
    $region14: #{tpu_custom_call.1} parent=1 // pred_check
      _
    $region15: #{tpu_custom_call.1} parent=1 // pred_check_branch
      %20 = sbr.rel (0) target = $region17
    $region16: #{tpu_custom_call.1} parent=1 // pred_region
      _
    $region17: #{tpu_custom_call.1} parent=1 // pred_fallthru
      _
    // Predicated region
    $region18: #{tpu_custom_call.1} parent=1 // pred_check
      _
    $region19: #{tpu_custom_call.1} parent=1 // pred_check_branch
      %22 = sbr.rel (0) target = $region21
    $region20: #{tpu_custom_call.1} parent=1 // pred_region
      _
    $region21: #{tpu_custom_call.1} parent=1 // pred_fallthru
      _
    %v23 = vld [vmem:[%s0] sm:$0xff]
    %v24 = vld [vmem:[%s0 + $0x8] sm:$0xff]
    %v25 = vld [vmem:[%s0 + $0x10] sm:$0xff]
    %v26 = vld [vmem:[%s0 + $0x18] sm:$0xff]
    %v27 = vld [vmem:[%s1] sm:$0xff]
    %v28 = vld [vmem:[%s1 + $0x8] sm:$0xff]
    %v29 = vld [vmem:[%s1 + $0x10] sm:$0xff]
    %v30 = vld [vmem:[%s1 + $0x18] sm:$0xff]
    %v31 = vld [vmem:[%s2] sm:$0x1]
    %v33 = vlaneseq
    %v34 = vshrl.u32 %v33, 7
    %v35 = vsub.s32 0, %v34
    %v36 = vrot.slane %v31, %v35
    %vm38 = vcmask 261120
    %v40 = vsel %vm38, %v23, 0
    %v43 = vsel %vm38, %v24, 0
    %v46 = vsel %vm38, %v25, 0
    %v49 = vsel %vm38, %v26, 0
    %51 = vmatprep.subr.mxu0 0.0
    %52 = vmatpush1.msra.mxu0 %v27
    %53 = vmatprep.subr.mxu0 0.0
    %54 = vmatpush1.msra.mxu0 %v28
    %55 = vmatprep.subr.mxu0 0.0
    %56 = vmatpush1.msra.mxu0 %v29
    %57 = vmatprep.subr.mxu0 0.0
    %58 = vmatpush1.msra.mxu0 %v30
    %59 = vmatprep.subr.mxu0 0.0
    %60 = vmatpush1.msra.mxu0 0.0
    %61 = vmatprep.subr.mxu0 0.0
    %62 = vmatpush1.msra.mxu0 0.0
    %63 = vmatprep.subr.mxu0 0.0
    %64 = vmatpush1.msra.mxu0 0.0
    %65 = vmatprep.subr.mxu0 0.0
    %66 = vmatpush1.msra.mxu0 0.0
    %67 = vmatprep.subr.mxu0 0.0
    %68 = vmatpush1.msra.mxu0 0.0
    %69 = vmatprep.subr.mxu0 0.0
    %70 = vmatpush1.msra.mxu0 0.0
    %71 = vmatprep.subr.mxu0 0.0
    %72 = vmatpush1.msra.mxu0 0.0
    %73 = vmatprep.subr.mxu0 0.0
    %74 = vmatpush1.msra.mxu0 0.0
    %75 = vmatprep.subr.mxu0 0.0
    %76 = vmatpush1.msra.mxu0 0.0
    %77 = vmatprep.subr.mxu0 0.0
    %78 = vmatpush1.msra.mxu0 0.0
    %79 = vmatprep.subr.mxu0 0.0
    %80 = vmatpush1.msra.mxu0 0.0
    %81 = vmatprep.subr.mxu0 0.0
    %82 = vmatpush1.msra.mxu0 0.0
    %83 = vmatprep.subr.mxu0 0.0
    %84 = vmatpush1.msra.mxu0 0.0
    %85 = vmatprep.subr.mxu0 0.0
    %86 = vmatpush1.msra.mxu0 0.0
    %87 = vmatprep.subr.mxu0 0.0
    %88 = vmatpush1.msra.mxu0 0.0
    %89 = vmatprep.subr.mxu0 0.0
    %90 = vmatpush1.msra.mxu0 0.0
    %91 = vmatprep.subr.mxu0 0.0
    %92 = vmatpush1.msra.mxu0 0.0
    %93 = vmatprep.subr.mxu0 0.0
    %94 = vmatpush1.msra.mxu0 0.0
    %95 = vmatprep.subr.mxu0 0.0
    %96 = vmatpush1.msra.mxu0 0.0
    %97 = vmatprep.subr.mxu0 0.0
    %98 = vmatpush1.msra.mxu0 0.0
    %99 = vmatprep.subr.mxu0 0.0
    %100 = vmatpush1.msra.mxu0 0.0
    %101 = vmatprep.subr.mxu0 0.0
    %102 = vmatpush1.msra.mxu0 0.0
    %103 = vmatprep.subr.mxu0 0.0
    %104 = vmatpush1.msra.mxu0 0.0
    %105 = vmatprep.subr.mxu0 0.0
    %106 = vmatpush1.msra.mxu0 0.0
    %107 = vmatprep.subr.mxu0 0.0
    %108 = vmatpush1.msra.mxu0 0.0
    %109 = vmatprep.subr.mxu0 0.0
    %110 = vmatpush1.msra.mxu0 0.0
    %111 = vmatprep.subr.mxu0 0.0
    %112 = vmatpush1.msra.mxu0 0.0
    %113 = vmatprep.subr.mxu0 0.0
    %114 = vmatpush1.msra.mxu0 0.0
    %115 = vmatprep.mubr.f32.mxu0 0.0
    %116 = vmatmul.mubr.f32.gmra.mrb[0].mxu0 %v40
    %v117 = vpop.f32.mrb[0].mxu0
    %v118 = vadd.f32 %v36, %v117
    %v119 = vpop.f32.mrb[0].mxu0
    %120 = vmatprep.mubr.f32.mxu0 0.0
    %121 = vmatmul.mubr.f32.gmra.mrb[0].mxu0 %v43
    %v122 = vpop.f32.mrb[0].mxu0
    %v123 = vadd.f32 %v36, %v122
    %v124 = vpop.f32.mrb[0].mxu0
    %125 = vmatprep.mubr.f32.mxu0 0.0
    %126 = vmatmul.mubr.f32.gmra.mrb[0].mxu0 %v46
    %v127 = vpop.f32.mrb[0].mxu0
    %v128 = vadd.f32 %v36, %v127
    %v129 = vpop.f32.mrb[0].mxu0
    %130 = vmatprep.mubr.f32.mxu0 0.0
    %131 = vmatmul.mubr.f32.gmra.mrb[0].mxu0 %v49
    %v132 = vpop.f32.mrb[0].mxu0
    %v133 = vadd.f32 %v36, %v132
    %v134 = vpop.f32.mrb[0].mxu0
    %135 = vdwg.mxu0
    %v136 = vmax.f32 %v118, 0.0
    %v137 = vmax.f32 %v123, 0.0
    %v138 = vmax.f32 %v128, 0.0
    %v139 = vmax.f32 %v133, 0.0
    %v140 = vld [vmem:[%s3] sm:$0xff]
    %v141 = vld [vmem:[%s3 + $0x8] sm:$0xff]
    %v142 = vld [vmem:[%s3 + $0x10] sm:$0xff]
    %v143 = vld [vmem:[%s3 + $0x18] sm:$0xff]
    %v144 = vld [vmem:[%s3 + $0x20] sm:$0xff]
    %v145 = vld [vmem:[%s3 + $0x28] sm:$0xff]
    %v146 = vld [vmem:[%s3 + $0x30] sm:$0xff]
    %v147 = vld [vmem:[%s3 + $0x38] sm:$0xff]
    %v148 = vld [vmem:[%s4] sm:$0x1]
    %v150 = vlaneseq
    %v151 = vshrl.u32 %v150, 7
    %v152 = vsub.s32 0, %v151
    %v153 = vrot.slane %v148, %v152
    %vm155 = vcmask 523264
    %v157 = vsel %vm155, %v136, 0
    %v160 = vsel %vm155, %v137, 0
    %v163 = vsel %vm155, %v138, 0
    %v166 = vsel %vm155, %v139, 0
    %168 = vmatprep.subr.mxu0 0.0
    %169 = vmatpush1.msra.mxu0 %v140
    %170 = vmatprep.subr.mxu0 0.0
    %171 = vmatpush1.msra.mxu0 %v141
    %172 = vmatprep.subr.mxu0 0.0
    %173 = vmatpush1.msra.mxu0 %v142
    %174 = vmatprep.subr.mxu0 0.0
    %175 = vmatpush1.msra.mxu0 %v143
    %176 = vmatprep.subr.mxu0 0.0
    %177 = vmatpush1.msra.mxu0 %v144
    %178 = vmatprep.subr.mxu0 0.0
    %179 = vmatpush1.msra.mxu0 %v145
    %180 = vmatprep.subr.mxu0 0.0
    %181 = vmatpush1.msra.mxu0 %v146
    %182 = vmatprep.subr.mxu0 0.0
    %183 = vmatpush1.msra.mxu0 %v147
    %184 = vmatprep.subr.mxu0 0.0
    %185 = vmatpush1.msra.mxu0 0.0
    %186 = vmatprep.subr.mxu0 0.0
    %187 = vmatpush1.msra.mxu0 0.0
    %188 = vmatprep.subr.mxu0 0.0
    %189 = vmatpush1.msra.mxu0 0.0
    %190 = vmatprep.subr.mxu0 0.0
    %191 = vmatpush1.msra.mxu0 0.0
    %192 = vmatprep.subr.mxu0 0.0
    %193 = vmatpush1.msra.mxu0 0.0
    %194 = vmatprep.subr.mxu0 0.0
    %195 = vmatpush1.msra.mxu0 0.0
    %196 = vmatprep.subr.mxu0 0.0
    %197 = vmatpush1.msra.mxu0 0.0
    %198 = vmatprep.subr.mxu0 0.0
    %199 = vmatpush1.msra.mxu0 0.0
    %200 = vmatprep.subr.mxu0 0.0
    %201 = vmatpush1.msra.mxu0 0.0
    %202 = vmatprep.subr.mxu0 0.0
    %203 = vmatpush1.msra.mxu0 0.0
    %204 = vmatprep.subr.mxu0 0.0
    %205 = vmatpush1.msra.mxu0 0.0
    %206 = vmatprep.subr.mxu0 0.0
    %207 = vmatpush1.msra.mxu0 0.0
    %208 = vmatprep.subr.mxu0 0.0
    %209 = vmatpush1.msra.mxu0 0.0
    %210 = vmatprep.subr.mxu0 0.0
    %211 = vmatpush1.msra.mxu0 0.0
    %212 = vmatprep.subr.mxu0 0.0
    %213 = vmatpush1.msra.mxu0 0.0
    %214 = vmatprep.subr.mxu0 0.0
    %215 = vmatpush1.msra.mxu0 0.0
    %216 = vmatprep.subr.mxu0 0.0
    %217 = vmatpush1.msra.mxu0 0.0
    %218 = vmatprep.subr.mxu0 0.0
    %219 = vmatpush1.msra.mxu0 0.0
    %220 = vmatprep.subr.mxu0 0.0
    %221 = vmatpush1.msra.mxu0 0.0
    %222 = vmatprep.subr.mxu0 0.0
    %223 = vmatpush1.msra.mxu0 0.0
    %224 = vmatprep.subr.mxu0 0.0
    %225 = vmatpush1.msra.mxu0 0.0
    %226 = vmatprep.subr.mxu0 0.0
    %227 = vmatpush1.msra.mxu0 0.0
    %228 = vmatprep.subr.mxu0 0.0
    %229 = vmatpush1.msra.mxu0 0.0
    %230 = vmatprep.subr.mxu0 0.0
    %231 = vmatpush1.msra.mxu0 0.0
    %232 = vmatprep.mubr.f32.mxu0 0.0
    %233 = vmatmul.mubr.f32.gmra.mrb[0].mxu0 %v157
    %v234 = vpop.f32.mrb[0].mxu0
    %v235 = vadd.f32 %v153, %v234
    %v236 = vpop.f32.mrb[0].mxu0
    %237 = vmatprep.mubr.f32.mxu0 0.0
    %238 = vmatmul.mubr.f32.gmra.mrb[0].mxu0 %v160
    %v239 = vpop.f32.mrb[0].mxu0
    %v240 = vadd.f32 %v153, %v239
    %v241 = vpop.f32.mrb[0].mxu0
    %242 = vmatprep.mubr.f32.mxu0 0.0
    %243 = vmatmul.mubr.f32.gmra.mrb[0].mxu0 %v163
    %v244 = vpop.f32.mrb[0].mxu0
    %v245 = vadd.f32 %v153, %v244
    %v246 = vpop.f32.mrb[0].mxu0
    %247 = vmatprep.mubr.f32.mxu0 0.0
    %248 = vmatmul.mubr.f32.gmra.mrb[0].mxu0 %v166
    %v249 = vpop.f32.mrb[0].mxu0
    %v250 = vadd.f32 %v153, %v249
    %v251 = vpop.f32.mrb[0].mxu0
    %252 = vdwg.mxu0
    %253 = vst.msk [vmem:[#allocation2] sm:$0xff] %vm155, %v136
    %254 = vst.msk [vmem:[#allocation2 + $0x8] sm:$0xff] %vm155, %v137
    %255 = vst.msk [vmem:[#allocation2 + $0x10] sm:$0xff] %vm155, %v138
    %256 = vst.msk [vmem:[#allocation2 + $0x18] sm:$0xff] %vm155, %v139
    %vm257 = vcmask 130048
    %258 = vst.msk [vmem:[%s5] sm:$0xff] %vm257, %v235
    %259 = vst.msk [vmem:[%s5 + $0x8] sm:$0xff] %vm257, %v240
    %260 = vst.msk [vmem:[%s5 + $0x10] sm:$0xff] %vm257, %v245
    %261 = vst.msk [vmem:[%s5 + $0x18] sm:$0xff] %vm257, %v250
    // Predicated region
    $region22: #{tpu_custom_call.1} parent=1 // pred_check
      _
    $region23: #{tpu_custom_call.1} parent=1 // pred_check_branch
      %263 = sbr.rel (0) target = $region25
    $region24: #{tpu_custom_call.1} parent=1 // pred_region
      _
    $region25: #{tpu_custom_call.1} parent=1 // pred_fallthru
      _
    // Predicated region
    $region26: #{tpu_custom_call.1} parent=1 // pred_check
      _
    $region27: #{tpu_custom_call.1} parent=1 // pred_check_branch
      %265 = sbr.rel (0) target = $region29
    $region28: #{tpu_custom_call.1} parent=1 // pred_region
      %s267 = ssub.s32 512, 512
      %268 = vsyncadd [#allocation3], %s267
      %s269 = sshll.u32 [#allocation2], 4
      %s270 = int_to_ptr.vmem [resolvable:$true] %s269
      %275 = dma.vmem_to_hbm [thread:$0]  %s270, 512, %s6, [#allocation3], 128, 128, 8
    $region29: #{tpu_custom_call.1} parent=1 // pred_fallthru
      _
    // Predicated region
    $region30: #{tpu_custom_call.1} parent=1 // pred_check
      _
    $region31: #{tpu_custom_call.1} parent=1 // pred_check_branch
      %277 = sbr.rel (0) target = $region33
    $region32: #{tpu_custom_call.1} parent=1 // pred_region
      _
    $region33: #{tpu_custom_call.1} parent=1 // pred_fallthru
      _
    // Predicated region
    $region34: #{tpu_custom_call.1} parent=1 // pred_check
      _
    $region35: #{tpu_custom_call.1} parent=1 // pred_check_branch
      %279 = sbr.rel (0) target = $region37
    $region36: #{tpu_custom_call.1} parent=1 // pred_region
      %280 = dma.done [#allocation3], 512
    $region37: #{tpu_custom_call.1} parent=1 // pred_fallthru
      _
    %281 = vsyncpa [#allocation3], 1

</llo_original>
